<compile_context>
chip_gen: v6e
topology: v6e:2x2x1
jax: 0.10.0
libtpu: 0.0.40
codegen_flags: <defaults>
</compile_context>

<pallas_src>
import jax
import jax.numpy as jnp
from jax.experimental import pallas as pl
from jax.experimental.pallas import tpu as pltpu


def skipgram_kernel(x_ref, w_ref, b_ref, o_ref):
    # x_ref: VMEM (TB, D)  bf16  -- gathered embedding rows for this batch tile
    # w_ref: VMEM (D, TN)  bf16  -- output-layer weight tile (pre-transposed)
    # b_ref: VMEM (1, TN)  f32   -- output-layer bias tile
    # o_ref: VMEM (TB, TN) f32   -- logits tile
    acc = jnp.dot(x_ref[...], w_ref[...], preferred_element_type=jnp.float32)
    o_ref[...] = (acc + b_ref[...]).astype(o_ref.dtype)


def _round_up(x, m):
    return (x + m - 1) // m * m


def skipgram_forward(center_word, embedding, weight, bias, *, tb=256, tn=512):
    """center_word: (B,) int32, embedding: (V, D), weight: (V, D) [PyTorch layout], bias: (V,)."""
    B = center_word.shape[0]
    V, D = embedding.shape
    assert weight.shape == (V, D) and bias.shape == (V,)

    # Embedding gather in the wrapper -> dense (B, D) activation for the GEMM kernel.
    x = jnp.take(embedding, center_word.astype(jnp.int32), axis=0)

    # bf16 inputs, f32 accumulate / bias / output.
    x = x.astype(jnp.bfloat16)
    w_t = weight.T.astype(jnp.bfloat16)            # (D, V)
    b2 = bias.reshape(1, V).astype(jnp.float32)    # (1, V)

    # Batch tiling (sublane dim: multiple of 8, up to tb=256 to match MXU height).
    TB = min(tb, _round_up(B, 8))
    B_pad = _round_up(B, TB)
    if B_pad != B:
        x = jnp.pad(x, ((0, B_pad - B), (0, 0)))

    # Vocab tiling (lane dim: multiple of 128, lane-dense output tiles).
    V_pad = _round_up(V, 128)
    TN = min(tn, V_pad)
    V_pad = _round_up(V_pad, TN)
    if V_pad != V:
        w_t = jnp.pad(w_t, ((0, 0), (0, V_pad - V)))
        b2 = jnp.pad(b2, ((0, 0), (0, V_pad - V)))

    grid = (B_pad // TB, V_pad // TN)

    out = pl.pallas_call(
        skipgram_kernel,
        out_shape=jax.ShapeDtypeStruct((B_pad, V_pad), jnp.float32),
        grid=grid,
        in_specs=[
            pl.BlockSpec((TB, D), lambda i, j: (i, 0)),   # activation tile (resident across j)
            pl.BlockSpec((D, TN), lambda i, j: (0, j)),   # streamed weight tile
            pl.BlockSpec((1, TN), lambda i, j: (0, j)),   # streamed bias tile
        ],
        out_specs=pl.BlockSpec((TB, TN), lambda i, j: (i, j)),
        compiler_params=pltpu.CompilerParams(
            dimension_semantics=("parallel", "parallel")),
    )(x, w_t, b2)

    return out[:B, :V]


if __name__ == "__main__":
    # Small shapes consistent with the module (embedding_dim = 50 in the spec).
    vocab_size = 1000
    embedding_dim = 50
    batch = 40

    key = jax.random.PRNGKey(0)
    k_emb, k_w, k_b, k_idx = jax.random.split(key, 4)

    # Deterministic parameter init (mimics nn.Embedding ~ N(0,1), nn.Linear ~ U(-bound, bound)).
    embedding = jax.random.normal(k_emb, (vocab_size, embedding_dim), dtype=jnp.float32)
    bound = 1.0 / (embedding_dim ** 0.5)
    weight = jax.random.uniform(k_w, (vocab_size, embedding_dim),
                                minval=-bound, maxval=bound, dtype=jnp.float32)
    bias = jax.random.uniform(k_b, (vocab_size,),
                              minval=-bound, maxval=bound, dtype=jnp.float32)

    center_word = jax.random.randint(k_idx, (batch,), 0, vocab_size, dtype=jnp.int32)

    logits = skipgram_forward(center_word, embedding, weight, bias)
    logits = jax.block_until_ready(logits)

    # Pure-JAX reference (same bf16 inputs, f32 accumulation as the kernel).
    x_ref = embedding[center_word].astype(jnp.bfloat16)
    ref = jnp.dot(x_ref, weight.T.astype(jnp.bfloat16),
                  preferred_element_type=jnp.float32) + bias

    assert logits.shape == (batch, vocab_size)
    assert jnp.allclose(logits, ref, atol=1e-2, rtol=1e-2)

    print("KERNEL_OK")
</pallas_src>

<mosaic_0001>
module attributes {stable_mosaic.version = 11 : i64} {
  func.func @skipgram_kernel(%arg0: i32, %arg1: i32, %arg2: memref<40x50xbf16, #tpu.memory_space<vmem>>, %arg3: memref<50x512xbf16, #tpu.memory_space<vmem>>, %arg4: memref<1x512xf32, #tpu.memory_space<vmem>>, %arg5: memref<40x512xf32, #tpu.memory_space<vmem>>) attributes {dimension_semantics = [#tpu.dimension_semantics<parallel>, #tpu.dimension_semantics<parallel>], iteration_bounds = array<i64: 1, 2>, scalar_prefetch = 0 : i64, scratch_operands = 0 : i64, tpu.core_type = #tpu.core_type<tc>, window_params = [{transform_indices = @transform_0, window_bounds = array<i64: 40, 50>}, {transform_indices = @transform_1, window_bounds = array<i64: 50, 512>}, {transform_indices = @transform_2, window_bounds = array<i64: 1, 512>}, {transform_indices = @transform_3, window_bounds = array<i64: 40, 512>}]} {
    %c0 = arith.constant 0 : index
    %c0_0 = arith.constant 0 : index
    %0 = vector.load %arg2[%c0, %c0_0] : memref<40x50xbf16, #tpu.memory_space<vmem>>, vector<40x50xbf16>
    %c0_1 = arith.constant 0 : index
    %c0_2 = arith.constant 0 : index
    %1 = vector.load %arg3[%c0_1, %c0_2] : memref<50x512xbf16, #tpu.memory_space<vmem>>, vector<50x512xbf16>
    %cst = arith.constant dense<0.000000e+00> : vector<40x512xf32>
    %2 = tpu.matmul %0, %1, %cst {dimension_numbers = #tpu.dot_dimension_numbers<[1], [0], [0], [1], [0, 0, 1, 1], [], []>} : vector<40x50xbf16>, vector<50x512xbf16>, vector<40x512xf32> -> vector<40x512xf32>
    %c0_3 = arith.constant 0 : index
    %c0_4 = arith.constant 0 : index
    %3 = vector.load %arg4[%c0_3, %c0_4] : memref<1x512xf32, #tpu.memory_space<vmem>>, vector<1x512xf32>
    %4 = vector.broadcast %3 : vector<1x512xf32> to vector<40x512xf32>
    %5 = arith.addf %2, %4 : vector<40x512xf32>
    %c0_5 = arith.constant 0 : index
    %c0_6 = arith.constant 0 : index
    %6 = vector.load %arg5[%c0_5, %c0_6] : memref<40x512xf32, #tpu.memory_space<vmem>>, vector<40x512xf32>
    tpu.vector_store %arg5[%c0_5, %c0_6], %5 {strides = array<i32>} : memref<40x512xf32, #tpu.memory_space<vmem>>, vector<40x512xf32>,
    return
  }
  func.func @transform_0(%arg0: i32, %arg1: i32) -> (i32, i32) {
    %c0_i32 = arith.constant 0 : i32
    %c0_i32_0 = arith.constant 0 : i32
    return %arg0, %c0_i32 : i32, i32
  }
  func.func @transform_1(%arg0: i32, %arg1: i32) -> (i32, i32) {
    %c0_i32 = arith.constant 0 : i32
    %c0_i32_0 = arith.constant 0 : i32
    return %c0_i32, %arg1 : i32, i32
  }
  func.func @transform_2(%arg0: i32, %arg1: i32) -> (i32, i32) {
    %c0_i32 = arith.constant 0 : i32
    %c0_i32_0 = arith.constant 0 : i32
    return %c0_i32, %arg1 : i32, i32
  }
  func.func @transform_3(%arg0: i32, %arg1: i32) -> (i32, i32) {
    %c0_i32 = arith.constant 0 : i32
    return %arg0, %arg1 : i32, i32
  }
}

</mosaic_0001>

<llo_original>
// kernel: tpu_custom_call.1
$region0: #{tpu_custom_call.1}
  #allocation0 [shape = 'u32[]', space=smem, size = 0x4, offset = 0x4, fixed_abs, tag = 'smem constant byte address 0x4 - core index']
  #allocation1 [shape = 'u32[144,128]{1,0:T(1,128)}', space=vmem, size = 0x12000, scoped, tag = 'internal scratch']
  %s0 = inlined_call_operand.hbm [shape: bf16[40,50], index: 0, kind: input, shape index: {}]
  %s1 = inlined_call_operand.hbm [shape: bf16[50,1024], index: 1, kind: input, shape index: {}]
  %s2 = inlined_call_operand.hbm [shape: f32[1,1024], index: 2, kind: input, shape index: {}]
  %s3 = inlined_call_operand.hbm [shape: f32[40,1024], index: 3, kind: output, shape index: {}]
  %s4 = sld [smem:[#allocation0]]
  $region57: #{tpu_custom_call.1} parent=0
    _
  %s6 = ssub.s32 1, %s4
  %s7 = scalar_select 0, %s6, %s4
  $region1: #{tpu_custom_call.1} parent=0
    #allocation2 [shape = 'u8[10240]{0}', space=vmem, size = 0x2800, scoped, tag = 'input window, operand 0, single buffered']
    #allocation3 [shape = 's32[2]{0}', space=sflag, size = 0x8, scoped, tag = 'scoped memory for tpu_custom_call.1']
    #allocation4 [shape = 's32[2]{0}', space=sflag, size = 0x8, scoped, tag = 'scoped memory for tpu_custom_call.1']
    #allocation5 [shape = 'u8[114688]{0}', space=vmem, size = 0x1c000, scoped, tag = 'input window, operand 1']
    #allocation6 [shape = 's32[2]{0}', space=sflag, size = 0x8, scoped, tag = 'scoped memory for tpu_custom_call.1']
    #allocation7 [shape = 'u8[4096]{0}', space=vmem, size = 0x1000, scoped, tag = 'input window, operand 2']
    #allocation8 [shape = 'u8[163840]{0}', space=vmem, size = 0x28000, scoped, tag = 'output window, operand 0']
    %8 = vsyncpa [#allocation3], 0
    %9 = vsyncpa [#allocation6], 0
    %s10 = scalar_lea.sflag [#allocation6], 1
    %11 = vsyncpa %s10, 0
    %12 = vsyncpa [#allocation4], 0
    %s13 = scalar_lea.sflag [#allocation4], 1
    %14 = vsyncpa %s13, 0
    loop: start=0, step=1, limit=4
    $region2: #{tpu_custom_call.1} parent=1 // loop_pre_header
      _
    $region3: #{tpu_custom_call.1} parent=1 // loop_header
      %s16 = sphi 0, %s20
      %p17 = scmp.ge.s32.totalorder %s16, 4
      %s23 = sphi 0, %s35
      %s24 = sphi 0, %s31
      %s25 = sphi 0, %s23
      %s26 = sphi 0, %s24
      %s27 = sphi 0, %s25
      %s28 = sphi 0, %s26
      %s38 = sphi 0, %s40
      %s41 = sphi 0, %s38
      %s42 = sphi 0, %s41
      %s58 = sphi 0, %s42
      %s64 = sphi 0, %s66
      %s67 = sphi 0, %s64
      %s68 = sphi 0, %s67
      %s84 = sphi 0, %s68
      %s90 = sphi 0, %s92
      %s93 = sphi 0, %s90
      %s94 = sphi 0, %s93
      %s110 = sphi 0, %s94
      %s118 = sphi 0, %s120
      %s121 = sphi 0, %s118
      %s122 = sphi 0, %s121
      %s138 = sphi 0, %s122
    $region4: #{tpu_custom_call.1} parent=1 // loop_header_branch
      %19 = sbr.rel (%p17) target = $region8
    $region5: #{tpu_custom_call.1} parent=1 // loop_body
      %s21 = ssub.s32 %s16, 1
      %s22 = ssub.s32 %s16, 2
      %s29 = sadd.s32 1, %s24
      %p30 = scmp.ge.s32.totalorder %s29, 2
      %s31 = scalar_select %p30, 0, %s29
      %s32 = sadd.s32 1, %s23
      %s33 = scalar_select %p30, %s32, %s23
      %p34 = scmp.ge.s32.totalorder %s33, 1
      %s35 = scalar_select %p34, 0, %s33
      %s36 = ssub.s32 %s23, %s35
      %p37 = scmp.eq.s32.totalorder %s36, 0
      %s39 = sadd.s32 %s38, 1
      %s40 = scalar_select %p37, %s38, %s39
      %p43 = pneg %p37
      %p44 = scmp.eq.s32.totalorder %s16, 1
      %p45 = por %p43, %p44
      %p46 = scmp.ne.s32.totalorder %s38, %s41
      %p47 = scmp.eq.s32.totalorder %s16, 0
      %p48 = por %p46, %p47
      %p49 = scmp.ne.s32.totalorder %s38, %s41
      %p50 = scmp.eq.s32.totalorder %s21, 1
      %p51 = por %p49, %p50
      %p52 = scmp.ne.s32.totalorder %s41, %s42
      %p53 = scmp.eq.s32.totalorder %s21, 0
      %p54 = por %p52, %p53
      %p55 = scmp.ne.s32.totalorder %s41, %s42
      %p56 = scmp.eq.s32.totalorder %s22, 1
      %p57 = por %p55, %p56
      %p59 = scmp.ne.s32.totalorder %s42, %s58
      %p60 = scmp.eq.s32.totalorder %s22, 0
      %p61 = por %p59, %p60
      %s62 = ssub.s32 %s24, %s31
      %p63 = scmp.eq.s32.totalorder %s62, 0
      %s65 = sadd.s32 %s64, 1
      %s66 = scalar_select %p63, %s64, %s65
      %p69 = pneg %p63
      %p70 = scmp.eq.s32.totalorder %s16, 1
      %p71 = por %p69, %p70
      %p72 = scmp.ne.s32.totalorder %s64, %s67
      %p73 = scmp.eq.s32.totalorder %s16, 0
      %p74 = por %p72, %p73
      %p75 = scmp.ne.s32.totalorder %s64, %s67
      %p76 = scmp.eq.s32.totalorder %s21, 1
      %p77 = por %p75, %p76
      %p78 = scmp.ne.s32.totalorder %s67, %s68
      %p79 = scmp.eq.s32.totalorder %s21, 0
      %p80 = por %p78, %p79
      %p81 = scmp.ne.s32.totalorder %s67, %s68
      %p82 = scmp.eq.s32.totalorder %s22, 1
      %p83 = por %p81, %p82
      %p85 = scmp.ne.s32.totalorder %s68, %s84
      %p86 = scmp.eq.s32.totalorder %s22, 0
      %p87 = por %p85, %p86
      %s88 = ssub.s32 %s24, %s31
      %p89 = scmp.eq.s32.totalorder %s88, 0
      %s91 = sadd.s32 %s90, 1
      %s92 = scalar_select %p89, %s90, %s91
      %p95 = pneg %p89
      %p96 = scmp.eq.s32.totalorder %s16, 1
      %p97 = por %p95, %p96
      %p98 = scmp.ne.s32.totalorder %s90, %s93
      %p99 = scmp.eq.s32.totalorder %s16, 0
      %p100 = por %p98, %p99
      %p101 = scmp.ne.s32.totalorder %s90, %s93
      %p102 = scmp.eq.s32.totalorder %s21, 1
      %p103 = por %p101, %p102
      %p104 = scmp.ne.s32.totalorder %s93, %s94
      %p105 = scmp.eq.s32.totalorder %s21, 0
      %p106 = por %p104, %p105
      %p107 = scmp.ne.s32.totalorder %s93, %s94
      %p108 = scmp.eq.s32.totalorder %s22, 1
      %p109 = por %p107, %p108
      %p111 = scmp.ne.s32.totalorder %s94, %s110
      %p112 = scmp.eq.s32.totalorder %s22, 0
      %p113 = por %p111, %p112
      %s114 = ssub.s32 %s23, %s35
      %s115 = ssub.s32 %s24, %s31
      %s116 = sor.u32 %s114, %s115
      %p117 = scmp.eq.s32.totalorder %s116, 0
      %s119 = sadd.s32 %s118, 1
      %s120 = scalar_select %p117, %s118, %s119
      %p123 = pneg %p117
      %p124 = scmp.eq.s32.totalorder %s16, 1
      %p125 = por %p123, %p124
      %p126 = scmp.ne.s32.totalorder %s118, %s121
      %p127 = scmp.eq.s32.totalorder %s16, 0
      %p128 = por %p126, %p127
      %p129 = scmp.ne.s32.totalorder %s118, %s121
      %p130 = scmp.eq.s32.totalorder %s21, 1
      %p131 = por %p129, %p130
      %p132 = scmp.ne.s32.totalorder %s121, %s122
      %p133 = scmp.eq.s32.totalorder %s21, 0
      %p134 = por %p132, %p133
      %p135 = scmp.ne.s32.totalorder %s121, %s122
      %p136 = scmp.eq.s32.totalorder %s22, 1
      %p137 = por %p135, %p136
      %p139 = scmp.ne.s32.totalorder %s122, %s138
      %p140 = scmp.eq.s32.totalorder %s22, 0
      %p141 = por %p139, %p140
      %p142 = scmp.le.s32.totalorder 1, %s16
      %p143 = scmp.lt.s32.totalorder %s16, 3
      %p144 = pnand %p142, %p143
      %p145 = pneg %p144
      // Predicated region
      $region9: #{tpu_custom_call.1} parent=5 // pred_check
        _
      $region10: #{tpu_custom_call.1} parent=5 // pred_check_branch
        %147 = sbr.rel (%p144) target = $region12
      $region11: #{tpu_custom_call.1} parent=5 // pred_region
        %s148 = ssub.s32 %s16, 1
        // Predicated region
        $region13: #{tpu_custom_call.1} parent=11 // pred_check
          %p149 = pneg %p54
        $region14: #{tpu_custom_call.1} parent=11 // pred_check_branch
          %151 = sbr.rel (%p149) target = $region16
        $region15: #{tpu_custom_call.1} parent=11 // pred_region
          %s152 = smul.u32 5, %s25
          %s154 = ssub.s32 320, 320
          %155 = vsyncadd [#allocation3], %s154
          %s156 = smul.addr %s152, 64
          %s157 = scalar_lea.hbm %s0, %s156
          %s158 = sshll.u32 [#allocation2], 4
          %s159 = int_to_ptr.vmem [resolvable:$true] %s158
          %164 = dma.hbm_to_vmem [thread:$0]  %s157, 320, %s159, [#allocation3], 64, 64, 4
        $region16: #{tpu_custom_call.1} parent=11 // pred_fallthru
          _
      $region12: #{tpu_custom_call.1} parent=5 // pred_fallthru
        _
      %p165 = scmp.lt.s32.totalorder %s16, 2
      // Predicated region
      $region17: #{tpu_custom_call.1} parent=5 // pred_check
        %p166 = pneg %p165
      $region18: #{tpu_custom_call.1} parent=5 // pred_check_branch
        %168 = sbr.rel (%p166) target = $region20
      $region19: #{tpu_custom_call.1} parent=5 // pred_region
        // Predicated region
        $region21: #{tpu_custom_call.1} parent=19 // pred_check
          %p169 = pneg %p74
        $region22: #{tpu_custom_call.1} parent=19 // pred_check_branch
          %171 = sbr.rel (%p169) target = $region24
        $region23: #{tpu_custom_call.1} parent=19 // pred_region
          %s172 = sand.u32 %s16, 1
          %s173 = scalar_lea.sflag [#allocation6], %s172
          %s174 = sand.u32 %s64, 1
          %s175 = smul.addr %s174, 112
          %s176 = scalar_lea.vmem [#allocation5], %s175
          %s177 = smul.u32 4, %s24
          %s179 = ssub.s32 1792, 1792
          %180 = vsyncadd %s173, %s179
          %s181 = smul.addr %s177, 64
          %s182 = scalar_lea.hbm %s1, %s181
          %s183 = sshll.u32 %s176, 4
          %s184 = int_to_ptr.vmem [resolvable:$true] %s183
          %189 = dma.hbm_to_vmem [thread:$0]  %s182, 1792, %s184, %s173, 512, 256, 16
        $region24: #{tpu_custom_call.1} parent=19 // pred_fallthru
          _
        // Predicated region
        $region25: #{tpu_custom_call.1} parent=19 // pred_check
          %p190 = pneg %p100
        $region26: #{tpu_custom_call.1} parent=19 // pred_check_branch
          %192 = sbr.rel (%p190) target = $region28
        $region27: #{tpu_custom_call.1} parent=19 // pred_region
          %s193 = sand.u32 %s16, 1
          %s194 = scalar_lea.sflag [#allocation6], %s193
          %s195 = sand.u32 %s90, 1
          %s196 = smul.addr %s195, 4
          %s197 = scalar_lea.vmem [#allocation7], %s196
          %s198 = smul.u32 4, %s24
          %s200 = ssub.s32 64, 64
          %201 = vsyncadd %s194, %s200
          %s202 = smul.addr %s198, 16
          %s203 = scalar_lea.hbm %s2, %s202
          %s205 = sshll.u32 %s197, 4
          %s206 = int_to_ptr.vmem [resolvable:$true] %s205
          %208 = dma.hbm_to_vmem [thread:$0]  %s203, 64, %s206, %s194
        $region28: #{tpu_custom_call.1} parent=19 // pred_fallthru
          _
      $region20: #{tpu_custom_call.1} parent=5 // pred_fallthru
        _
      %p209 = scmp.le.s32.totalorder 1, %s16
      %p210 = scmp.lt.s32.totalorder %s16, 3
      %p211 = pnand %p209, %p210
      %p212 = pneg %p211
      // Predicated region
      $region29: #{tpu_custom_call.1} parent=5 // pred_check
        _
      $region30: #{tpu_custom_call.1} parent=5 // pred_check_branch
        %214 = sbr.rel (%p211) target = $region32
      $region31: #{tpu_custom_call.1} parent=5 // pred_region
        %s215 = ssub.s32 %s16, 1
        // Predicated region
        $region33: #{tpu_custom_call.1} parent=31 // pred_check
          %p216 = pneg %p54
        $region34: #{tpu_custom_call.1} parent=31 // pred_check_branch
          %218 = sbr.rel (%p216) target = $region36
        $region35: #{tpu_custom_call.1} parent=31 // pred_region
          %219 = dma.done [#allocation3], 320
        $region36: #{tpu_custom_call.1} parent=31 // pred_fallthru
          _
        %s220 = sand.u32 %s21, 1
        %s221 = scalar_lea.sflag [#allocation6], %s220
        %s222 = sand.u32 %s67, 1
        %s223 = smul.addr %s222, 112
        %s224 = scalar_lea.vmem [#allocation5], %s223
        // Predicated region
        $region37: #{tpu_custom_call.1} parent=31 // pred_check
          %p225 = pneg %p80
        $region38: #{tpu_custom_call.1} parent=31 // pred_check_branch
          %227 = sbr.rel (%p225) target = $region40
        $region39: #{tpu_custom_call.1} parent=31 // pred_region
          %228 = dma.done %s221, 1792
        $region40: #{tpu_custom_call.1} parent=31 // pred_fallthru
          _
        %s229 = sand.u32 %s21, 1
        %s230 = scalar_lea.sflag [#allocation6], %s229
        %s231 = sand.u32 %s93, 1
        %s232 = smul.addr %s231, 4
        %s233 = scalar_lea.vmem [#allocation7], %s232
        // Predicated region
        $region41: #{tpu_custom_call.1} parent=31 // pred_check
          %p234 = pneg %p106
        $region42: #{tpu_custom_call.1} parent=31 // pred_check_branch
          %236 = sbr.rel (%p234) target = $region44
        $region43: #{tpu_custom_call.1} parent=31 // pred_region
          %237 = dma.done %s230, 64
        $region44: #{tpu_custom_call.1} parent=31 // pred_fallthru
          _
        %p238 = pneg %p54
        %p239 = pneg %p51
        %s240 = sand.u32 %s21, 1
        %s241 = scalar_lea.sflag [#allocation6], %s240
        %s242 = sand.u32 %s67, 1
        %s243 = smul.addr %s242, 112
        %s244 = scalar_lea.vmem [#allocation5], %s243
        %p245 = pneg %p80
        %p246 = pneg %p77
        %s247 = sand.u32 %s21, 1
        %s248 = scalar_lea.sflag [#allocation6], %s247
        %s249 = sand.u32 %s93, 1
        %s250 = smul.addr %s249, 4
        %s251 = scalar_lea.vmem [#allocation7], %s250
        %p252 = pneg %p106
        %p253 = pneg %p103
        %p254 = pneg %p134
        %p255 = pneg %p131
        %s256 = sand.u32 %s121, 1
        %s257 = scalar_lea.sflag [#allocation4], %s256
        %s258 = sand.u32 %s121, 1
        %s259 = smul.addr %s258, 160
        %s260 = scalar_lea.vmem [#allocation8], %s259
        %s261 = smul.u32 5, %s25
        %s262 = smul.u32 4, %s26
        %s263 = smul.u32 4, %s26
        %s264 = smul.u32 5, %s25
        %s265 = smul.u32 4, %s26
        %v267 = vld [vmem:[#allocation2] sm:$0xf]
        %v268 = vld [vmem:[#allocation2 + $0x4] sm:$0xf]
        %v269 = vld [vmem:[#allocation2 + $0x8] sm:$0xf]
        %v270 = vld [vmem:[#allocation2 + $0xc] sm:$0xf]
        %v271 = vld [vmem:[#allocation2 + $0x10] sm:$0xf]
        %v272 = vld [vmem:[%s224] sm:$0xff]
        %v273 = vld [vmem:[%s224 + $0x8] sm:$0xff]
        %v274 = vld [vmem:[%s224 + $0x10] sm:$0xff]
        %v275 = vld [vmem:[%s224 + $0x18] sm:$0xff]
        %v276 = vld [vmem:[%s224 + $0x20] sm:$0xff]
        %v277 = vld [vmem:[%s224 + $0x28] sm:$0xff]
        %v278 = vld [vmem:[%s224 + $0x30] sm:$0xff]
        %v279 = vld [vmem:[%s224 + $0x38] sm:$0xff]
        %v280 = vld [vmem:[%s224 + $0x40] sm:$0xff]
        %v281 = vld [vmem:[%s224 + $0x48] sm:$0xff]
        %v282 = vld [vmem:[%s224 + $0x50] sm:$0xff]
        %v283 = vld [vmem:[%s224 + $0x58] sm:$0xff]
        %v284 = vld [vmem:[%s224 + $0x60] sm:$0x11]
        %v285 = vld [vmem:[%s224 + $0x68] sm:$0x11]
        %v286 = vld [vmem:[%s233] sm:$0xf]
        %v288 = vlaneseq
        %v289 = vshrl.u32 %v288, 7
        %v290 = vsub.s32 0, %v289
        %v291 = vrot.slane %v286, %v290
        %v292 = vlaneseq
        %v293 = vshrl.u32 %v292, 7
        %v294 = vsub.s32 1, %v293
        %v295 = vrot.slane %v286, %v294
        %v296 = vlaneseq
        %v297 = vshrl.u32 %v296, 7
        %v298 = vsub.s32 2, %v297
        %v299 = vrot.slane %v286, %v298
        %v300 = vlaneseq
        %v301 = vshrl.u32 %v300, 7
        %v302 = vsub.s32 3, %v301
        %v303 = vrot.slane %v286, %v302
        %v313 = vunpack.c.l.b16 %v267
        %v314 = vunpack.c.l.b16 %v268
        %v315 = vunpack.c.l.b16 %v269
        %v316 = vunpack.c.l.b16 %v270
        %v317 = vunpack.c.l.b16 %v271
        %v318 = vpack.c.b16 %v314, %v313
        %v319 = vpack.c.b16 %v316, %v315
        %v320 = vpack.c.b16 %v317, %v317
        %v335 = vunpack.c.l.b16 %v272
        %v336 = vunpack.c.h.b16 %v272
        %v337 = vunpack.c.l.b16 %v273
        %v338 = vunpack.c.h.b16 %v273
        %v339 = vunpack.c.l.b16 %v274
        %v340 = vunpack.c.h.b16 %v274
        %v341 = vunpack.c.l.b16 %v275
        %v342 = vunpack.c.h.b16 %v275
        %v343 = vunpack.c.l.b16 %v276
        %v344 = vunpack.c.h.b16 %v276
        %v345 = vunpack.c.l.b16 %v277
        %v346 = vunpack.c.h.b16 %v277
        %v347 = vunpack.c.l.b16 %v278
        %v348 = vunpack.c.h.b16 %v278
        %v349 = vunpack.c.l.b16 %v279
        %v350 = vunpack.c.h.b16 %v279
        %v351 = vunpack.c.l.b16 %v280
        %v352 = vunpack.c.h.b16 %v280
        %v353 = vunpack.c.l.b16 %v281
        %v354 = vunpack.c.h.b16 %v281
        %v355 = vunpack.c.l.b16 %v282
        %v356 = vunpack.c.h.b16 %v282
        %v357 = vunpack.c.l.b16 %v283
        %v358 = vunpack.c.h.b16 %v283
        %v359 = vunpack.c.l.b16 %v284
        %v360 = vunpack.c.h.b16 %v284
        %v361 = vunpack.c.l.b16 %v285
        %v362 = vunpack.c.h.b16 %v285
        %v363 = vpack.c.b16 %v339, %v335
        %v364 = vpack.c.b16 %v340, %v336
        %v365 = vpack.c.b16 %v341, %v337
        %v366 = vpack.c.b16 %v342, %v338
        %v367 = vpack.c.b16 %v347, %v343
        %v368 = vpack.c.b16 %v348, %v344
        %v369 = vpack.c.b16 %v349, %v345
        %v370 = vpack.c.b16 %v350, %v346
        %v371 = vpack.c.b16 %v355, %v351
        %v372 = vpack.c.b16 %v356, %v352
        %v373 = vpack.c.b16 %v357, %v353
        %v374 = vpack.c.b16 %v358, %v354
        %v375 = vpack.c.b16 %v359, %v359
        %v376 = vpack.c.b16 %v360, %v360
        %v377 = vpack.c.b16 %v361, %v361
        %v378 = vpack.c.b16 %v362, %v362
        %vm391 = vcmask 408576
        %v393 = vsel %vm391, %v318, 0
        %v396 = vsel %vm391, %v319, 0
        %v399 = vsel %vm391, %v320, 0
        %vm401 = vcmask 1040384
        %v403 = vsel %vm401, %v375, 0
        %v406 = vsel %vm401, %v376, 0
        %v409 = vsel %vm401, %v377, 0
        %v412 = vsel %vm401, %v378, 0
        %414 = vmatprep.subr.bf16.mxu0 0
        %415 = vmatpush1.bf16.msra.mxu0 0
        %416 = vmatprep.subr.bf16.mxu0 0
        %417 = vmatpush1.bf16.msra.mxu0 0
        %418 = vmatprep.subr.bf16.mxu0 0
        %419 = vmatpush1.bf16.msra.mxu0 0
        %420 = vmatprep.subr.bf16.mxu0 0
        %421 = vmatpush1.bf16.msra.mxu0 0
        %422 = vmatprep.subr.bf16.mxu0 %v406
        %423 = vmatpush1.bf16.msra.mxu0 %v403
        %424 = vmatprep.subr.bf16.mxu0 %v372
        %425 = vmatpush1.bf16.msra.mxu0 %v371
        %426 = vmatprep.subr.bf16.mxu0 %v368
        %427 = vmatpush1.bf16.msra.mxu0 %v367
        %428 = vmatprep.subr.bf16.mxu0 %v364
        %429 = vmatpush1.bf16.msra.mxu0 %v363
        %430 = vmatprep.subr.bf16.mxu0 0
        %431 = vmatpush2.bf16.msra.mxu0 0
        %432 = vmatprep.subr.bf16.mxu0 0
        %433 = vmatpush2.bf16.msra.mxu0 0
        %434 = vmatprep.subr.bf16.mxu0 0
        %435 = vmatpush2.bf16.msra.mxu0 0
        %436 = vmatprep.subr.bf16.mxu0 0
        %437 = vmatpush2.bf16.msra.mxu0 0
        %438 = vmatprep.subr.bf16.mxu0 0
        %439 = vmatpush2.bf16.msra.mxu0 0
        %440 = vmatprep.subr.bf16.mxu0 0
        %441 = vmatpush2.bf16.msra.mxu0 0
        %442 = vmatprep.subr.bf16.mxu0 0
        %443 = vmatpush2.bf16.msra.mxu0 0
        %444 = vmatprep.subr.bf16.mxu0 0
        %445 = vmatpush2.bf16.msra.mxu0 0
        %446 = vmatprep.mubr.bf16.mxu0 0
        %447 = vmatmul.mubr.bf16.gmra.mxu0 %v393
        %v448 = vpop.f32.mrf.mxu0
        %v449 = vadd.f32 %v291, %v448
        %v450 = vpop.f32.mrf.mxu0
        %v451 = vadd.f32 %v295, %v450
        %v452 = vpop.f32.mrf.mxu0
        %v453 = vadd.f32 %v291, %v452
        %v454 = vpop.f32.mrf.mxu0
        %v455 = vadd.f32 %v295, %v454
        %456 = vmatprep.mubr.bf16.mxu0 0
        %457 = vmatmul.mubr.bf16.gmra.mxu0 %v396
        %v458 = vpop.f32.mrf.mxu0
        %v459 = vadd.f32 %v291, %v458
        %v460 = vpop.f32.mrf.mxu0
        %v461 = vadd.f32 %v295, %v460
        %v462 = vpop.f32.mrf.mxu0
        %v463 = vadd.f32 %v291, %v462
        %v464 = vpop.f32.mrf.mxu0
        %v465 = vadd.f32 %v295, %v464
        %466 = vmatprep.mubr.bf16.mxu0 0
        %467 = vmatmul.mubr.bf16.gmra.mxu0 %v399
        %v468 = vpop.f32.mrf.mxu0
        %v469 = vadd.f32 %v291, %v468
        %v470 = vpop.f32.mrf.mxu0
        %v471 = vadd.f32 %v295, %v470
        %v472 = vpop.f32.mrf.mxu0
        %v473 = vpop.f32.mrf.mxu0
        %474 = vdwg.mxu0
        %475 = vmatprep.subr.bf16.mxu0 0
        %476 = vmatpush1.bf16.msra.mxu0 0
        %477 = vmatprep.subr.bf16.mxu0 0
        %478 = vmatpush1.bf16.msra.mxu0 0
        %479 = vmatprep.subr.bf16.mxu0 0
        %480 = vmatpush1.bf16.msra.mxu0 0
        %481 = vmatprep.subr.bf16.mxu0 0
        %482 = vmatpush1.bf16.msra.mxu0 0
        %483 = vmatprep.subr.bf16.mxu0 %v412
        %484 = vmatpush1.bf16.msra.mxu0 %v409
        %485 = vmatprep.subr.bf16.mxu0 %v374
        %486 = vmatpush1.bf16.msra.mxu0 %v373
        %487 = vmatprep.subr.bf16.mxu0 %v370
        %488 = vmatpush1.bf16.msra.mxu0 %v369
        %489 = vmatprep.subr.bf16.mxu0 %v366
        %490 = vmatpush1.bf16.msra.mxu0 %v365
        %491 = vmatprep.subr.bf16.mxu0 0
        %492 = vmatpush2.bf16.msra.mxu0 0
        %493 = vmatprep.subr.bf16.mxu0 0
        %494 = vmatpush2.bf16.msra.mxu0 0
        %495 = vmatprep.subr.bf16.mxu0 0
        %496 = vmatpush2.bf16.msra.mxu0 0
        %497 = vmatprep.subr.bf16.mxu0 0
        %498 = vmatpush2.bf16.msra.mxu0 0
        %499 = vmatprep.subr.bf16.mxu0 0
        %500 = vmatpush2.bf16.msra.mxu0 0
        %501 = vmatprep.subr.bf16.mxu0 0
        %502 = vmatpush2.bf16.msra.mxu0 0
        %503 = vmatprep.subr.bf16.mxu0 0
        %504 = vmatpush2.bf16.msra.mxu0 0
        %505 = vmatprep.subr.bf16.mxu0 0
        %506 = vmatpush2.bf16.msra.mxu0 0
        %507 = vmatprep.mubr.bf16.mxu0 0
        %508 = vmatmul.mubr.bf16.gmra.mxu0 %v393
        %v509 = vpop.f32.mrf.mxu0
        %v510 = vadd.f32 %v299, %v509
        %v511 = vpop.f32.mrf.mxu0
        %v512 = vadd.f32 %v303, %v511
        %v513 = vpop.f32.mrf.mxu0
        %v514 = vadd.f32 %v299, %v513
        %v515 = vpop.f32.mrf.mxu0
        %v516 = vadd.f32 %v303, %v515
        %517 = vmatprep.mubr.bf16.mxu0 0
        %518 = vmatmul.mubr.bf16.gmra.mxu0 %v396
        %v519 = vpop.f32.mrf.mxu0
        %v520 = vadd.f32 %v299, %v519
        %v521 = vpop.f32.mrf.mxu0
        %v522 = vadd.f32 %v303, %v521
        %v523 = vpop.f32.mrf.mxu0
        %v524 = vadd.f32 %v299, %v523
        %v525 = vpop.f32.mrf.mxu0
        %v526 = vadd.f32 %v303, %v525
        %527 = vmatprep.mubr.bf16.mxu0 0
        %528 = vmatmul.mubr.bf16.gmra.mxu0 %v399
        %v529 = vpop.f32.mrf.mxu0
        %v530 = vadd.f32 %v299, %v529
        %v531 = vpop.f32.mrf.mxu0
        %v532 = vadd.f32 %v303, %v531
        %v533 = vpop.f32.mrf.mxu0
        %v534 = vpop.f32.mrf.mxu0
        %535 = vdwg.mxu0
        %536 = vst [vmem:[%s260] sm:$0xff] %v449
        %537 = vst [vmem:[%s260 + $0x8] sm:$0xff] %v451
        %538 = vst [vmem:[%s260 + $0x10] sm:$0xff] %v510
        %539 = vst [vmem:[%s260 + $0x18] sm:$0xff] %v512
        %540 = vst [vmem:[%s260 + $0x20] sm:$0xff] %v453
        %541 = vst [vmem:[%s260 + $0x28] sm:$0xff] %v455
        %542 = vst [vmem:[%s260 + $0x30] sm:$0xff] %v514
        %543 = vst [vmem:[%s260 + $0x38] sm:$0xff] %v516
        %544 = vst [vmem:[%s260 + $0x40] sm:$0xff] %v459
        %545 = vst [vmem:[%s260 + $0x48] sm:$0xff] %v461
        %546 = vst [vmem:[%s260 + $0x50] sm:$0xff] %v520
        %547 = vst [vmem:[%s260 + $0x58] sm:$0xff] %v522
        %548 = vst [vmem:[%s260 + $0x60] sm:$0xff] %v463
        %549 = vst [vmem:[%s260 + $0x68] sm:$0xff] %v465
        %550 = vst [vmem:[%s260 + $0x70] sm:$0xff] %v524
        %551 = vst [vmem:[%s260 + $0x78] sm:$0xff] %v526
        %552 = vst [vmem:[%s260 + $0x80] sm:$0xff] %v469
        %553 = vst [vmem:[%s260 + $0x88] sm:$0xff] %v471
        %554 = vst [vmem:[%s260 + $0x90] sm:$0xff] %v530
        %555 = vst [vmem:[%s260 + $0x98] sm:$0xff] %v532
        %s556 = sand.u32 %s121, 1
        %s557 = scalar_lea.sflag [#allocation4], %s556
        %s558 = sand.u32 %s121, 1
        %s559 = smul.addr %s558, 160
        %s560 = scalar_lea.vmem [#allocation8], %s559
        // Predicated region
        $region45: #{tpu_custom_call.1} parent=31 // pred_check
          %p561 = pneg %p131
        $region46: #{tpu_custom_call.1} parent=31 // pred_check_branch
          %563 = sbr.rel (%p561) target = $region48
        $region47: #{tpu_custom_call.1} parent=31 // pred_region
          %s564 = smul.u32 5, %s25
          %s565 = smul.u32 4, %s26
          %s567 = ssub.s32 2560, 2560
          %568 = vsyncadd %s557, %s567
          %s569 = smul.addr %s564, 8
          %s570 = sadd.s32 %s565, %s569
          %s571 = smul.addr %s570, 128
          %s572 = scalar_lea.hbm %s3, %s571
          %s573 = sshll.u32 %s560, 4
          %s574 = int_to_ptr.vmem [resolvable:$true] %s573
          %579 = dma.vmem_to_hbm [thread:$0]  %s574, 2560, %s572, %s557, 512, 1024, 32
        $region48: #{tpu_custom_call.1} parent=31 // pred_fallthru
          _
      $region32: #{tpu_custom_call.1} parent=5 // pred_fallthru
        _
      %p580 = scmp.le.s32.totalorder 2, %s16
      // Predicated region
      $region49: #{tpu_custom_call.1} parent=5 // pred_check
        %p581 = pneg %p580
      $region50: #{tpu_custom_call.1} parent=5 // pred_check_branch
        %583 = sbr.rel (%p581) target = $region52
      $region51: #{tpu_custom_call.1} parent=5 // pred_region
        %s584 = ssub.s32 %s16, 2
        // Predicated region
        $region53: #{tpu_custom_call.1} parent=51 // pred_check
          %p585 = pneg %p137
        $region54: #{tpu_custom_call.1} parent=51 // pred_check_branch
          %587 = sbr.rel (%p585) target = $region56
        $region55: #{tpu_custom_call.1} parent=51 // pred_region
          %s588 = sand.u32 %s122, 1
          %s589 = scalar_lea.sflag [#allocation4], %s588
          %s590 = sand.u32 %s122, 1
          %s591 = smul.addr %s590, 160
          %s592 = scalar_lea.vmem [#allocation8], %s591
          %593 = dma.done %s589, 2560
        $region56: #{tpu_custom_call.1} parent=51 // pred_fallthru
          _
      $region52: #{tpu_custom_call.1} parent=5 // pred_fallthru
        _
    $region6: #{tpu_custom_call.1} parent=1 // loop_footer
      %s20 = sadd.s32 1, %s16
    $region7: #{tpu_custom_call.1} parent=1 // loop_footer_branch
      %15 = sbr.rel target = $region3
    $region8: #{tpu_custom_call.1} parent=1 // loop_exit
      _
    %594 = vsyncpa [#allocation3], 1
    %s595 = scalar_lea.sflag [#allocation3], 1
    %596 = vsyncpa %s595, 1
    %597 = vsyncpa [#allocation6], 1
    %s598 = scalar_lea.sflag [#allocation6], 1
    %599 = vsyncpa %s598, 1
    %600 = vsyncpa [#allocation4], 1
    %s601 = scalar_lea.sflag [#allocation4], 1
    %602 = vsyncpa %s601, 1

</llo_original>
